<compile_context>
chip_gen: v6e
topology: v6e:2x2x1
jax: 0.10.0
libtpu: 0.0.40
codegen_flags: <defaults>
</compile_context>

<pallas_src>
import functools

import jax
import jax.numpy as jnp
from jax.experimental import pallas as pl
from jax.experimental.pallas import tpu as pltpu


def _round_up(x, m):
    return (x + m - 1) // m * m


def _cdiv(a, b):
    return (a + b - 1) // b


# --------------------------------------------------------------------------- #
# Kernel
# --------------------------------------------------------------------------- #
def _fused_mlp_kernel(s_ref, a_ref, w1s_ref, w1a_ref, b1_ref, w2_ref, b2_ref, o_ref):
    # Layer 1: two small MXU matmuls (== [state|action] @ block_diag(ws1, wa1)),
    # f32 accumulate, bias add + tanh in f32 on the 64 real hidden lanes only.
    h = jnp.tanh(
        jnp.dot(s_ref[...], w1s_ref[...], preferred_element_type=jnp.float32)
        + jnp.dot(a_ref[...], w1a_ref[...], preferred_element_type=jnp.float32)
        + b1_ref[...]
    )
    # Layer 2: cast hidden to the weight dtype so bf16 hits the MXU natively.
    out = (
        jnp.dot(h.astype(w2_ref.dtype), w2_ref[...],
                preferred_element_type=jnp.float32)
        + b2_ref[...]
    )
    o_ref[...] = out.astype(o_ref.dtype)


# --------------------------------------------------------------------------- #
# Host-side parameter fusion (done once, weights are static). No lane padding.
# --------------------------------------------------------------------------- #
def fuse_params(params, compute_dtype=jnp.float32, out_dtype=None):
    ws1, bs1 = params["ws1"], params["bs1"]
    ws2, bs2 = params["ws2"], params["bs2"]
    wa1, ba1 = params["wa1"], params["ba1"]
    wa2, ba2 = params["wa2"], params["ba2"]

    state_dim, h_s = ws1.shape
    action_dim, h_a = wa1.shape
    embed_dim = ws2.shape[1]
    hidden = h_s + h_a

    # Split block-diagonal first layer into two per-input weight slabs:
    #   [state|action] @ block_diag(ws1, wa1) == state @ W1s + action @ W1a
    w1s = jnp.zeros((state_dim, hidden), jnp.float32).at[:, :h_s].set(ws1)
    w1a = jnp.zeros((action_dim, hidden), jnp.float32).at[:, h_s:].set(wa1)
    b1 = jnp.concatenate([bs1, ba1], axis=1)              # (1, hidden)

    # Stacked second layer; second-layer biases summed host-side.
    w2 = jnp.concatenate([ws2, wa2], axis=0)               # (hidden, embed_dim)
    b2 = bs2 + ba2                                          # (1, embed_dim)

    if out_dtype is None:
        out_dtype = compute_dtype
    return dict(
        w1s=w1s.astype(compute_dtype),
        w1a=w1a.astype(compute_dtype),
        b1=b1,                      # biases stay f32 (added post-accumulate)
        w2=w2.astype(compute_dtype),
        b2=b2,
        dims=(state_dim, action_dim, hidden, embed_dim),
        compute_dtype=compute_dtype,
        out_dtype=out_dtype,
    )


# --------------------------------------------------------------------------- #
# Jitted implementation (cast + batch pad + kernel + row slice, all fused)
# --------------------------------------------------------------------------- #
@functools.partial(jax.jit, static_argnames=("tile_b", "b_pad", "out_dtype"))
def _deep_map_forward_impl(state, action, w1s, w1a, b1, w2, b2,
                           *, tile_b, b_pad, out_dtype):
    B = state.shape[0]
    cd = w1s.dtype
    state_dim = state.shape[1]
    action_dim = action.shape[1]
    hidden = w2.shape[0]
    embed_dim = w2.shape[1]

    # Batch pad to tile_b * num_tiles (fused with the dtype cast under jit).
    s = jnp.zeros((b_pad, state_dim), cd).at[:B, :].set(state.astype(cd))
    a = jnp.zeros((b_pad, action_dim), cd).at[:B, :].set(action.astype(cd))

    grid = (b_pad // tile_b,)
    out = pl.pallas_call(
        _fused_mlp_kernel,
        out_shape=jax.ShapeDtypeStruct((b_pad, embed_dim), out_dtype),
        grid_spec=pltpu.PrefetchScalarGridSpec(
            num_scalar_prefetch=0,
            grid=grid,
            in_specs=[
                # Activations: batch-tiled, last dim == full array dim (legal).
                pl.BlockSpec((tile_b, state_dim), lambda i: (i, 0)),
                pl.BlockSpec((tile_b, action_dim), lambda i: (i, 0)),
                # Weights/biases: constant index_map -> VMEM-resident across steps.
                pl.BlockSpec((state_dim, hidden), lambda i: (0, 0)),
                pl.BlockSpec((action_dim, hidden), lambda i: (0, 0)),
                pl.BlockSpec((1, hidden), lambda i: (0, 0)),
                pl.BlockSpec((hidden, embed_dim), lambda i: (0, 0)),
                pl.BlockSpec((1, embed_dim), lambda i: (0, 0)),
            ],
            out_specs=pl.BlockSpec((tile_b, embed_dim), lambda i: (i, 0)),
        ),
        compiler_params=pltpu.CompilerParams(
            dimension_semantics=("parallel",),   # batch axis shards across TCs on v7x
        ),
    )(s, a, w1s, w1a, b1, w2, b2)
    return out[:B, :]


# --------------------------------------------------------------------------- #
# Public wrapper: tile selection
# --------------------------------------------------------------------------- #
def deep_map_forward(state, action, fused, *, max_tile_b=None):
    """forward(state, action) = state_embed(state) + action_embed(action)."""
    cd = fused["compute_dtype"]
    out_dtype = fused["out_dtype"]
    B = state.shape[0]

    # Sublane granularity: bf16 packs two rows/sublane.
    sub = 16 if jnp.dtype(cd) == jnp.dtype(jnp.bfloat16) else 8
    if max_tile_b is None:
        max_tile_b = 4096 if sub == 16 else 2048

    b_r = _round_up(B, sub)
    # Balanced tiles: padding waste capped at one sublane group (never ~2x work).
    num_tiles = _cdiv(b_r, max_tile_b)
    # Prefer >= 2 grid steps (when the batch allows) so both v7x TCs get work.
    if num_tiles < 2 and b_r >= 2 * sub:
        num_tiles = 2
    tile_b = _round_up(_cdiv(b_r, num_tiles), sub)
    b_pad = tile_b * num_tiles

    return _deep_map_forward_impl(
        state, action,
        fused["w1s"], fused["w1a"], fused["b1"], fused["w2"], fused["b2"],
        tile_b=tile_b, b_pad=b_pad, out_dtype=out_dtype,
    )


# --------------------------------------------------------------------------- #
# Synthetic params + pure-JAX reference
# --------------------------------------------------------------------------- #
def init_params(key, state_dim, action_dim, hidden_obs, hidden_act):
    """Deterministic parameter init (synthetic weights, not a checkpoint)."""
    assert hidden_act[-1] == hidden_obs[-1], "Last hidden dim must match"
    ks = jax.random.split(key, 8)

    def lin(kw, kb, d_in, d_out):
        scale = 1.0 / jnp.sqrt(d_in)
        w = jax.random.uniform(kw, (d_in, d_out), jnp.float32, -scale, scale)
        b = jax.random.uniform(kb, (1, d_out), jnp.float32, -scale, scale)
        return w, b

    ws1, bs1 = lin(ks[0], ks[1], state_dim, hidden_obs[0])
    ws2, bs2 = lin(ks[2], ks[3], hidden_obs[0], hidden_obs[1])
    wa1, ba1 = lin(ks[4], ks[5], action_dim, hidden_act[0])
    wa2, ba2 = lin(ks[6], ks[7], hidden_act[0], hidden_act[1])
    return dict(ws1=ws1, bs1=bs1, ws2=ws2, bs2=bs2,
                wa1=wa1, ba1=ba1, wa2=wa2, ba2=ba2)


def reference_forward(state, action, p):
    hs = jnp.tanh(state @ p["ws1"] + p["bs1"])
    se = hs @ p["ws2"] + p["bs2"]
    ha = jnp.tanh(action @ p["wa1"] + p["ba1"])
    ae = ha @ p["wa2"] + p["ba2"]
    return se + ae


# --------------------------------------------------------------------------- #
# Demo / correctness check
# --------------------------------------------------------------------------- #
if __name__ == "__main__":
    # Small shapes consistent with the module:
    #   state_dim=16, action_dim=8, hidden_dim_obs=hidden_dim_act=[32, 32]
    state_dim, action_dim = 16, 8
    hidden_obs = [32, 32]
    hidden_act = [32, 32]
    embed_dim = hidden_obs[-1]

    key = jax.random.PRNGKey(0)
    k_params, k_state, k_action = jax.random.split(key, 3)
    params = init_params(k_params, state_dim, action_dim, hidden_obs, hidden_act)

    fused_f32 = fuse_params(params, compute_dtype=jnp.float32)
    fused_bf16 = fuse_params(params, compute_dtype=jnp.bfloat16)

    # B=8: single-tile path; B=37: exercises batch padding + 2 grid steps.
    for B in (8, 37):
        ks, ka = jax.random.split(jax.random.fold_in(k_state, B), 2)
        state = jax.random.normal(ks, (B, state_dim), jnp.float32)
        action = jax.random.normal(ka, (B, action_dim), jnp.float32)
        ref = reference_forward(state, action, params)

        # f32 path (exact check).
        out_f32 = jax.block_until_ready(deep_map_forward(state, action, fused_f32))
        assert out_f32.shape == (B, embed_dim)
        assert jnp.allclose(out_f32, ref, atol=1e-5, rtol=1e-5), "f32 mismatch vs reference"

        # bf16 activation-I/O path (loose check; inputs/weights/output bf16,
        # f32 MXU accumulate + f32 tanh).
        out_bf16 = jax.block_until_ready(deep_map_forward(state, action, fused_bf16))
        assert out_bf16.shape == (B, embed_dim)
        assert jnp.max(jnp.abs(out_bf16.astype(jnp.float32) - ref)) < 0.1, \
            "bf16 mismatch vs reference"

    print("KERNEL_OK")
</pallas_src>

<mosaic_0001>
module attributes {stable_mosaic.version = 11 : i64} {
  func.func @_fused_mlp_kernel(%arg0: i32, %arg1: memref<8x16xf32, #tpu.memory_space<vmem>>, %arg2: memref<8x8xf32, #tpu.memory_space<vmem>>, %arg3: memref<16x64xf32, #tpu.memory_space<vmem>>, %arg4: memref<8x64xf32, #tpu.memory_space<vmem>>, %arg5: memref<1x64xf32, #tpu.memory_space<vmem>>, %arg6: memref<64x32xf32, #tpu.memory_space<vmem>>, %arg7: memref<1x32xf32, #tpu.memory_space<vmem>>, %arg8: memref<8x32xf32, #tpu.memory_space<vmem>>) attributes {dimension_semantics = [#tpu.dimension_semantics<parallel>], iteration_bounds = array<i64: 1>, scalar_prefetch = 0 : i64, scratch_operands = 0 : i64, tpu.core_type = #tpu.core_type<tc>, window_params = [{transform_indices = @transform_0, window_bounds = array<i64: 8, 16>}, {transform_indices = @transform_1, window_bounds = array<i64: 8, 8>}, {pipeline_mode = #tpu.pipeline_mode<synchronous>, transform_indices = @transform_2, window_bounds = array<i64: 16, 64>}, {pipeline_mode = #tpu.pipeline_mode<synchronous>, transform_indices = @transform_3, window_bounds = array<i64: 8, 64>}, {pipeline_mode = #tpu.pipeline_mode<synchronous>, transform_indices = @transform_4, window_bounds = array<i64: 1, 64>}, {pipeline_mode = #tpu.pipeline_mode<synchronous>, transform_indices = @transform_5, window_bounds = array<i64: 64, 32>}, {pipeline_mode = #tpu.pipeline_mode<synchronous>, transform_indices = @transform_6, window_bounds = array<i64: 1, 32>}, {transform_indices = @transform_7, window_bounds = array<i64: 8, 32>}]} {
    %c0 = arith.constant 0 : index
    %c0_0 = arith.constant 0 : index
    %0 = vector.load %arg1[%c0, %c0_0] : memref<8x16xf32, #tpu.memory_space<vmem>>, vector<8x16xf32>
    %c0_1 = arith.constant 0 : index
    %c0_2 = arith.constant 0 : index
    %1 = vector.load %arg3[%c0_1, %c0_2] : memref<16x64xf32, #tpu.memory_space<vmem>>, vector<16x64xf32>
    %cst = arith.constant dense<0.000000e+00> : vector<8x64xf32>
    %2 = tpu.matmul %0, %1, %cst {dimension_numbers = #tpu.dot_dimension_numbers<[1], [0], [0], [1], [0, 0, 1, 1], [], []>} : vector<8x16xf32>, vector<16x64xf32>, vector<8x64xf32> -> vector<8x64xf32>
    %c0_3 = arith.constant 0 : index
    %c0_4 = arith.constant 0 : index
    %3 = vector.load %arg2[%c0_3, %c0_4] : memref<8x8xf32, #tpu.memory_space<vmem>>, vector<8x8xf32>
    %c0_5 = arith.constant 0 : index
    %c0_6 = arith.constant 0 : index
    %4 = vector.load %arg4[%c0_5, %c0_6] : memref<8x64xf32, #tpu.memory_space<vmem>>, vector<8x64xf32>
    %cst_7 = arith.constant dense<0.000000e+00> : vector<8x64xf32>
    %5 = tpu.matmul %3, %4, %cst_7 {dimension_numbers = #tpu.dot_dimension_numbers<[1], [0], [0], [1], [0, 0, 1, 1], [], []>} : vector<8x8xf32>, vector<8x64xf32>, vector<8x64xf32> -> vector<8x64xf32>
    %6 = arith.addf %2, %5 : vector<8x64xf32>
    %c0_8 = arith.constant 0 : index
    %c0_9 = arith.constant 0 : index
    %7 = vector.load %arg5[%c0_8, %c0_9] : memref<1x64xf32, #tpu.memory_space<vmem>>, vector<1x64xf32>
    %8 = vector.broadcast %7 : vector<1x64xf32> to vector<8x64xf32>
    %9 = arith.addf %6, %8 : vector<8x64xf32>
    %10 = math.tanh %9 : vector<8x64xf32>
    %c0_10 = arith.constant 0 : index
    %c0_11 = arith.constant 0 : index
    %11 = vector.load %arg6[%c0_10, %c0_11] : memref<64x32xf32, #tpu.memory_space<vmem>>, vector<64x32xf32>
    %cst_12 = arith.constant dense<0.000000e+00> : vector<8x32xf32>
    %12 = tpu.matmul %10, %11, %cst_12 {dimension_numbers = #tpu.dot_dimension_numbers<[1], [0], [0], [1], [0, 0, 1, 1], [], []>} : vector<8x64xf32>, vector<64x32xf32>, vector<8x32xf32> -> vector<8x32xf32>
    %c0_13 = arith.constant 0 : index
    %c0_14 = arith.constant 0 : index
    %13 = vector.load %arg7[%c0_13, %c0_14] : memref<1x32xf32, #tpu.memory_space<vmem>>, vector<1x32xf32>
    %14 = vector.broadcast %13 : vector<1x32xf32> to vector<8x32xf32>
    %15 = arith.addf %12, %14 : vector<8x32xf32>
    %c0_15 = arith.constant 0 : index
    %c0_16 = arith.constant 0 : index
    %16 = vector.load %arg8[%c0_15, %c0_16] : memref<8x32xf32, #tpu.memory_space<vmem>>, vector<8x32xf32>
    tpu.vector_store %arg8[%c0_15, %c0_16], %15 {strides = array<i32>} : memref<8x32xf32, #tpu.memory_space<vmem>>, vector<8x32xf32>,
    return
  }
  func.func @transform_0(%arg0: i32) -> (i32, i32) {
    %c0_i32 = arith.constant 0 : i32
    %c0_i32_0 = arith.constant 0 : i32
    return %arg0, %c0_i32 : i32, i32
  }
  func.func @transform_1(%arg0: i32) -> (i32, i32) {
    %c0_i32 = arith.constant 0 : i32
    %c0_i32_0 = arith.constant 0 : i32
    return %arg0, %c0_i32 : i32, i32
  }
  func.func @transform_2(%arg0: i32) -> (i32, i32) {
    %c0_i32 = arith.constant 0 : i32
    %c0_i32_0 = arith.constant 0 : i32
    %c0_i32_1 = arith.constant 0 : i32
    return %c0_i32, %c0_i32_0 : i32, i32
  }
  func.func @transform_3(%arg0: i32) -> (i32, i32) {
    %c0_i32 = arith.constant 0 : i32
    %c0_i32_0 = arith.constant 0 : i32
    %c0_i32_1 = arith.constant 0 : i32
    return %c0_i32, %c0_i32_0 : i32, i32
  }
  func.func @transform_4(%arg0: i32) -> (i32, i32) {
    %c0_i32 = arith.constant 0 : i32
    %c0_i32_0 = arith.constant 0 : i32
    %c0_i32_1 = arith.constant 0 : i32
    return %c0_i32, %c0_i32_0 : i32, i32
  }
  func.func @transform_5(%arg0: i32) -> (i32, i32) {
    %c0_i32 = arith.constant 0 : i32
    %c0_i32_0 = arith.constant 0 : i32
    %c0_i32_1 = arith.constant 0 : i32
    return %c0_i32, %c0_i32_0 : i32, i32
  }
  func.func @transform_6(%arg0: i32) -> (i32, i32) {
    %c0_i32 = arith.constant 0 : i32
    %c0_i32_0 = arith.constant 0 : i32
    %c0_i32_1 = arith.constant 0 : i32
    return %c0_i32, %c0_i32_0 : i32, i32
  }
  func.func @transform_7(%arg0: i32) -> (i32, i32) {
    %c0_i32 = arith.constant 0 : i32
    %c0_i32_0 = arith.constant 0 : i32
    return %arg0, %c0_i32 : i32, i32
  }
}

</mosaic_0001>

<llo_original>
// kernel: _deep_map_forward_impl.1
$region0: #{_deep_map_forward_impl.1}
  #allocation0 [shape = 'u32[]', space=smem, size = 0x4, offset = 0x4, fixed_abs, tag = 'smem constant byte address 0x4 - core index']
  #allocation1 [shape = 'u32[144,128]{1,0:T(1,128)}', space=vmem, size = 0x12000, scoped, tag = 'internal scratch']
  %s0 = inlined_call_operand.vmem [shape: f32[8,16], index: 0, kind: input, shape index: {}]
  %s1 = inlined_call_operand.vmem [shape: f32[8,8], index: 1, kind: input, shape index: {}]
  %s2 = inlined_call_operand.vmem [shape: f32[16,64], index: 2, kind: input, shape index: {}]
  %s3 = inlined_call_operand.vmem [shape: f32[8,64], index: 3, kind: input, shape index: {}]
  %s4 = inlined_call_operand.vmem [shape: f32[1,64], index: 4, kind: input, shape index: {}]
  %s5 = inlined_call_operand.vmem [shape: f32[64,32], index: 5, kind: input, shape index: {}]
  %s6 = inlined_call_operand.vmem [shape: f32[1,32], index: 6, kind: input, shape index: {}]
  %s7 = inlined_call_operand.hbm [shape: f32[8,32], index: 7, kind: output, shape index: {}]
  %s8 = sld [smem:[#allocation0]]
  $region38: #{_deep_map_forward_impl.1} parent=0
    _
  %s10 = ssub.s32 1, %s8
  %s11 = scalar_select 0, %s10, %s8
  $region1: #{_deep_map_forward_impl.1} parent=0
    #allocation2 [shape = 'u8[4096]{0}', space=vmem, size = 0x1000, scoped, tag = 'output window, operand 0, single buffered']
    #allocation3 [shape = 's32[1]{0}', space=sflag, size = 0x4, scoped, tag = 'scoped memory for _deep_map_forward_impl.1']
    %12 = vsyncpa [#allocation3], 0
    // Predicated region
    $region2: #{_deep_map_forward_impl.1} parent=1 // pred_check
      _
    $region3: #{_deep_map_forward_impl.1} parent=1 // pred_check_branch
      %14 = sbr.rel (0) target = $region5
    $region4: #{_deep_map_forward_impl.1} parent=1 // pred_region
      _
    $region5: #{_deep_map_forward_impl.1} parent=1 // pred_fallthru
      _
    // Predicated region
    $region6: #{_deep_map_forward_impl.1} parent=1 // pred_check
      _
    $region7: #{_deep_map_forward_impl.1} parent=1 // pred_check_branch
      %16 = sbr.rel (0) target = $region9
    $region8: #{_deep_map_forward_impl.1} parent=1 // pred_region
      _
    $region9: #{_deep_map_forward_impl.1} parent=1 // pred_fallthru
      _
    // Predicated region
    $region10: #{_deep_map_forward_impl.1} parent=1 // pred_check
      _
    $region11: #{_deep_map_forward_impl.1} parent=1 // pred_check_branch
      %18 = sbr.rel (0) target = $region13
    $region12: #{_deep_map_forward_impl.1} parent=1 // pred_region
      _
    $region13: #{_deep_map_forward_impl.1} parent=1 // pred_fallthru
      _
    // Predicated region
    $region14: #{_deep_map_forward_impl.1} parent=1 // pred_check
      _
    $region15: #{_deep_map_forward_impl.1} parent=1 // pred_check_branch
      %20 = sbr.rel (0) target = $region17
    $region16: #{_deep_map_forward_impl.1} parent=1 // pred_region
      _
    $region17: #{_deep_map_forward_impl.1} parent=1 // pred_fallthru
      _
    // Predicated region
    $region18: #{_deep_map_forward_impl.1} parent=1 // pred_check
      _
    $region19: #{_deep_map_forward_impl.1} parent=1 // pred_check_branch
      %22 = sbr.rel (0) target = $region21
    $region20: #{_deep_map_forward_impl.1} parent=1 // pred_region
      _
    $region21: #{_deep_map_forward_impl.1} parent=1 // pred_fallthru
      _
    // Predicated region
    $region22: #{_deep_map_forward_impl.1} parent=1 // pred_check
      _
    $region23: #{_deep_map_forward_impl.1} parent=1 // pred_check_branch
      %24 = sbr.rel (0) target = $region25
    $region24: #{_deep_map_forward_impl.1} parent=1 // pred_region
      _
    $region25: #{_deep_map_forward_impl.1} parent=1 // pred_fallthru
      _
    // Predicated region
    $region26: #{_deep_map_forward_impl.1} parent=1 // pred_check
      _
    $region27: #{_deep_map_forward_impl.1} parent=1 // pred_check_branch
      %26 = sbr.rel (0) target = $region29
    $region28: #{_deep_map_forward_impl.1} parent=1 // pred_region
      _
    $region29: #{_deep_map_forward_impl.1} parent=1 // pred_fallthru
      _
    %v27 = vld [vmem:[%s0] sm:$0xff]
    %v28 = vld [vmem:[%s2] sm:$0xff]
    %v29 = vld [vmem:[%s2 + $0x8] sm:$0xff]
    %v30 = vld [vmem:[%s1] sm:$0xff]
    %v31 = vld [vmem:[%s3] sm:$0xff]
    %vm32 = vcmask 64512
    %v34 = vsel %vm32, %v30, 0
    %36 = vmatprep.subr.mxu0 0.0
    %37 = vmatpush1.msra.mxu0 0.0
    %38 = vmatprep.subr.mxu0 0.0
    %39 = vmatpush1.msra.mxu0 0.0
    %40 = vmatprep.subr.mxu0 0.0
    %41 = vmatpush1.msra.mxu0 0.0
    %42 = vmatprep.subr.mxu0 0.0
    %43 = vmatpush1.msra.mxu0 0.0
    %44 = vmatprep.subr.mxu0 0.0
    %45 = vmatpush1.msra.mxu0 0.0
    %46 = vmatprep.subr.mxu0 0.0
    %47 = vmatpush1.msra.mxu0 0.0
    %48 = vmatprep.subr.mxu0 0.0
    %49 = vmatpush1.msra.mxu0 0.0
    %50 = vmatprep.subr.mxu0 0.0
    %51 = vmatpush1.msra.mxu0 0.0
    %52 = vmatprep.subr.mxu0 0.0
    %53 = vmatpush1.msra.mxu0 0.0
    %54 = vmatprep.subr.mxu0 0.0
    %55 = vmatpush1.msra.mxu0 0.0
    %56 = vmatprep.subr.mxu0 0.0
    %57 = vmatpush1.msra.mxu0 0.0
    %58 = vmatprep.subr.mxu0 0.0
    %59 = vmatpush1.msra.mxu0 0.0
    %60 = vmatprep.subr.mxu0 0.0
    %61 = vmatpush1.msra.mxu0 0.0
    %62 = vmatprep.subr.mxu0 0.0
    %63 = vmatpush1.msra.mxu0 0.0
    %64 = vmatprep.subr.mxu0 0.0
    %65 = vmatpush1.msra.mxu0 0.0
    %66 = vmatprep.subr.mxu0 0.0
    %67 = vmatpush1.msra.mxu0 %v31
    %68 = vmatprep.subr.mxu0 0.0
    %69 = vmatpush2.msra.mxu0 0.0
    %70 = vmatprep.subr.mxu0 0.0
    %71 = vmatpush2.msra.mxu0 0.0
    %72 = vmatprep.subr.mxu0 0.0
    %73 = vmatpush2.msra.mxu0 0.0
    %74 = vmatprep.subr.mxu0 0.0
    %75 = vmatpush2.msra.mxu0 0.0
    %76 = vmatprep.subr.mxu0 0.0
    %77 = vmatpush2.msra.mxu0 0.0
    %78 = vmatprep.subr.mxu0 0.0
    %79 = vmatpush2.msra.mxu0 0.0
    %80 = vmatprep.subr.mxu0 0.0
    %81 = vmatpush2.msra.mxu0 0.0
    %82 = vmatprep.subr.mxu0 0.0
    %83 = vmatpush2.msra.mxu0 0.0
    %84 = vmatprep.subr.mxu0 0.0
    %85 = vmatpush2.msra.mxu0 0.0
    %86 = vmatprep.subr.mxu0 0.0
    %87 = vmatpush2.msra.mxu0 0.0
    %88 = vmatprep.subr.mxu0 0.0
    %89 = vmatpush2.msra.mxu0 0.0
    %90 = vmatprep.subr.mxu0 0.0
    %91 = vmatpush2.msra.mxu0 0.0
    %92 = vmatprep.subr.mxu0 0.0
    %93 = vmatpush2.msra.mxu0 0.0
    %94 = vmatprep.subr.mxu0 0.0
    %95 = vmatpush2.msra.mxu0 0.0
    %96 = vmatprep.subr.mxu0 0.0
    %97 = vmatpush2.msra.mxu0 0.0
    %98 = vmatprep.subr.mxu0 0.0
    %99 = vmatpush2.msra.mxu0 0.0
    %100 = vmatprep.mubr.f32.mxu0 0.0
    %101 = vmatmul.mubr.f32.gmra.mxu0 %v34
    %v102 = vpop.f32.mrf.mxu0
    %v103 = vadd.f32 0.0, %v102
    %v104 = vpop.f32.mrf.mxu0
    %105 = vdwg.mxu0
    %vm106 = vcmask 130048
    %v108 = vsel %vm106, %v27, 0
    %110 = vmatprep.subr.mxu0 0.0
    %111 = vmatpush1.msra.mxu0 0.0
    %112 = vmatprep.subr.mxu0 0.0
    %113 = vmatpush1.msra.mxu0 0.0
    %114 = vmatprep.subr.mxu0 0.0
    %115 = vmatpush1.msra.mxu0 0.0
    %116 = vmatprep.subr.mxu0 0.0
    %117 = vmatpush1.msra.mxu0 0.0
    %118 = vmatprep.subr.mxu0 0.0
    %119 = vmatpush1.msra.mxu0 0.0
    %120 = vmatprep.subr.mxu0 0.0
    %121 = vmatpush1.msra.mxu0 0.0
    %122 = vmatprep.subr.mxu0 0.0
    %123 = vmatpush1.msra.mxu0 0.0
    %124 = vmatprep.subr.mxu0 0.0
    %125 = vmatpush1.msra.mxu0 0.0
    %126 = vmatprep.subr.mxu0 0.0
    %127 = vmatpush1.msra.mxu0 0.0
    %128 = vmatprep.subr.mxu0 0.0
    %129 = vmatpush1.msra.mxu0 0.0
    %130 = vmatprep.subr.mxu0 0.0
    %131 = vmatpush1.msra.mxu0 0.0
    %132 = vmatprep.subr.mxu0 0.0
    %133 = vmatpush1.msra.mxu0 0.0
    %134 = vmatprep.subr.mxu0 0.0
    %135 = vmatpush1.msra.mxu0 0.0
    %136 = vmatprep.subr.mxu0 0.0
    %137 = vmatpush1.msra.mxu0 0.0
    %138 = vmatprep.subr.mxu0 0.0
    %139 = vmatpush1.msra.mxu0 %v29
    %140 = vmatprep.subr.mxu0 0.0
    %141 = vmatpush1.msra.mxu0 %v28
    %142 = vmatprep.subr.mxu0 0.0
    %143 = vmatpush2.msra.mxu0 0.0
    %144 = vmatprep.subr.mxu0 0.0
    %145 = vmatpush2.msra.mxu0 0.0
    %146 = vmatprep.subr.mxu0 0.0
    %147 = vmatpush2.msra.mxu0 0.0
    %148 = vmatprep.subr.mxu0 0.0
    %149 = vmatpush2.msra.mxu0 0.0
    %150 = vmatprep.subr.mxu0 0.0
    %151 = vmatpush2.msra.mxu0 0.0
    %152 = vmatprep.subr.mxu0 0.0
    %153 = vmatpush2.msra.mxu0 0.0
    %154 = vmatprep.subr.mxu0 0.0
    %155 = vmatpush2.msra.mxu0 0.0
    %156 = vmatprep.subr.mxu0 0.0
    %157 = vmatpush2.msra.mxu0 0.0
    %158 = vmatprep.subr.mxu0 0.0
    %159 = vmatpush2.msra.mxu0 0.0
    %160 = vmatprep.subr.mxu0 0.0
    %161 = vmatpush2.msra.mxu0 0.0
    %162 = vmatprep.subr.mxu0 0.0
    %163 = vmatpush2.msra.mxu0 0.0
    %164 = vmatprep.subr.mxu0 0.0
    %165 = vmatpush2.msra.mxu0 0.0
    %166 = vmatprep.subr.mxu0 0.0
    %167 = vmatpush2.msra.mxu0 0.0
    %168 = vmatprep.subr.mxu0 0.0
    %169 = vmatpush2.msra.mxu0 0.0
    %170 = vmatprep.subr.mxu0 0.0
    %171 = vmatpush2.msra.mxu0 0.0
    %172 = vmatprep.subr.mxu0 0.0
    %173 = vmatpush2.msra.mxu0 0.0
    %174 = vmatprep.mubr.f32.mxu0 0.0
    %175 = vmatmul.mubr.f32.gmra.mxu0 %v108
    %v176 = vpop.f32.mrf.mxu0
    %v177 = vadd.f32 %v103, %v176
    %v178 = vpop.f32.mrf.mxu0
    %179 = vdwg.mxu0
    %v180 = vld [vmem:[%s4] sm:$0x1]
    %v182 = vlaneseq
    %v183 = vshrl.u32 %v182, 7
    %v184 = vsub.s32 0, %v183
    %v185 = vrot.slane %v180, %v184
    %v187 = vadd.f32 %v177, %v185
    %v188 = vtanh.pop %v187
    %v189 = vld [vmem:[%s5] sm:$0xff]
    %v190 = vld [vmem:[%s5 + $0x8] sm:$0xff]
    %v191 = vld [vmem:[%s5 + $0x10] sm:$0xff]
    %v192 = vld [vmem:[%s5 + $0x18] sm:$0xff]
    %v193 = vld [vmem:[%s5 + $0x20] sm:$0xff]
    %v194 = vld [vmem:[%s5 + $0x28] sm:$0xff]
    %v195 = vld [vmem:[%s5 + $0x30] sm:$0xff]
    %v196 = vld [vmem:[%s5 + $0x38] sm:$0xff]
    %v197 = vld [vmem:[%s6] sm:$0x1]
    %v199 = vlaneseq
    %v200 = vshrl.u32 %v199, 7
    %v201 = vsub.s32 0, %v200
    %v202 = vrot.slane %v197, %v201
    %vm204 = vcmask 523264
    %v206 = vsel %vm204, %v188, 0
    %208 = vmatprep.subr.mxu0 0.0
    %209 = vmatpush1.msra.mxu0 0.0
    %210 = vmatprep.subr.mxu0 0.0
    %211 = vmatpush1.msra.mxu0 0.0
    %212 = vmatprep.subr.mxu0 0.0
    %213 = vmatpush1.msra.mxu0 0.0
    %214 = vmatprep.subr.mxu0 0.0
    %215 = vmatpush1.msra.mxu0 0.0
    %216 = vmatprep.subr.mxu0 0.0
    %217 = vmatpush1.msra.mxu0 0.0
    %218 = vmatprep.subr.mxu0 0.0
    %219 = vmatpush1.msra.mxu0 0.0
    %220 = vmatprep.subr.mxu0 0.0
    %221 = vmatpush1.msra.mxu0 0.0
    %222 = vmatprep.subr.mxu0 0.0
    %223 = vmatpush1.msra.mxu0 0.0
    %224 = vmatprep.subr.mxu0 0.0
    %225 = vmatpush1.msra.mxu0 %v196
    %226 = vmatprep.subr.mxu0 0.0
    %227 = vmatpush1.msra.mxu0 %v195
    %228 = vmatprep.subr.mxu0 0.0
    %229 = vmatpush1.msra.mxu0 %v194
    %230 = vmatprep.subr.mxu0 0.0
    %231 = vmatpush1.msra.mxu0 %v193
    %232 = vmatprep.subr.mxu0 0.0
    %233 = vmatpush1.msra.mxu0 %v192
    %234 = vmatprep.subr.mxu0 0.0
    %235 = vmatpush1.msra.mxu0 %v191
    %236 = vmatprep.subr.mxu0 0.0
    %237 = vmatpush1.msra.mxu0 %v190
    %238 = vmatprep.subr.mxu0 0.0
    %239 = vmatpush1.msra.mxu0 %v189
    %240 = vmatprep.subr.mxu0 0.0
    %241 = vmatpush2.msra.mxu0 0.0
    %242 = vmatprep.subr.mxu0 0.0
    %243 = vmatpush2.msra.mxu0 0.0
    %244 = vmatprep.subr.mxu0 0.0
    %245 = vmatpush2.msra.mxu0 0.0
    %246 = vmatprep.subr.mxu0 0.0
    %247 = vmatpush2.msra.mxu0 0.0
    %248 = vmatprep.subr.mxu0 0.0
    %249 = vmatpush2.msra.mxu0 0.0
    %250 = vmatprep.subr.mxu0 0.0
    %251 = vmatpush2.msra.mxu0 0.0
    %252 = vmatprep.subr.mxu0 0.0
    %253 = vmatpush2.msra.mxu0 0.0
    %254 = vmatprep.subr.mxu0 0.0
    %255 = vmatpush2.msra.mxu0 0.0
    %256 = vmatprep.subr.mxu0 0.0
    %257 = vmatpush2.msra.mxu0 0.0
    %258 = vmatprep.subr.mxu0 0.0
    %259 = vmatpush2.msra.mxu0 0.0
    %260 = vmatprep.subr.mxu0 0.0
    %261 = vmatpush2.msra.mxu0 0.0
    %262 = vmatprep.subr.mxu0 0.0
    %263 = vmatpush2.msra.mxu0 0.0
    %264 = vmatprep.subr.mxu0 0.0
    %265 = vmatpush2.msra.mxu0 0.0
    %266 = vmatprep.subr.mxu0 0.0
    %267 = vmatpush2.msra.mxu0 0.0
    %268 = vmatprep.subr.mxu0 0.0
    %269 = vmatpush2.msra.mxu0 0.0
    %270 = vmatprep.subr.mxu0 0.0
    %271 = vmatpush2.msra.mxu0 0.0
    %272 = vmatprep.mubr.f32.mxu0 0.0
    %273 = vmatmul.mubr.f32.gmra.mxu0 %v206
    %v274 = vpop.f32.mrf.mxu0
    %v275 = vadd.f32 %v202, %v274
    %v276 = vpop.f32.mrf.mxu0
    %277 = vdwg.mxu0
    %vm278 = vcmask 261120
    %279 = vst.msk [vmem:[#allocation2] sm:$0xff] %vm278, %v275
    // Predicated region
    $region30: #{_deep_map_forward_impl.1} parent=1 // pred_check
      _
    $region31: #{_deep_map_forward_impl.1} parent=1 // pred_check_branch
      %281 = sbr.rel (0) target = $region33
    $region32: #{_deep_map_forward_impl.1} parent=1 // pred_region
      %s283 = ssub.s32 128, 128
      %284 = vsyncadd [#allocation3], %s283
      %s286 = sshll.u32 [#allocation2], 4
      %s287 = int_to_ptr.vmem [resolvable:$true] %s286
      %289 = dma.vmem_to_hbm [thread:$0]  %s287, 128, %s7, [#allocation3]
    $region33: #{_deep_map_forward_impl.1} parent=1 // pred_fallthru
      _
    // Predicated region
    $region34: #{_deep_map_forward_impl.1} parent=1 // pred_check
      _
    $region35: #{_deep_map_forward_impl.1} parent=1 // pred_check_branch
      %291 = sbr.rel (0) target = $region37
    $region36: #{_deep_map_forward_impl.1} parent=1 // pred_region
      %292 = dma.done [#allocation3], 128
    $region37: #{_deep_map_forward_impl.1} parent=1 // pred_fallthru
      _
    %293 = vsyncpa [#allocation3], 1

</llo_original>
